<compile_context>
chip_gen: v6e
topology: v6e:2x2x1
jax: 0.10.0
libtpu: 0.0.40
codegen_flags: <defaults>
</compile_context>

<pallas_src>
import jax
import jax.numpy as jnp
from jax import lax
from jax.experimental import pallas as pl
from jax.experimental.pallas import tpu as pltpu


def _bidaf_attention_kernel(
    c_ref,      # (Bt, Lc, H)   native dtype
    q_ref,      # (Bt, Lq, H)   native dtype
    cmask_ref,  # (Bt, Lc, 1)   f32, 1 = valid context token
    qmask_ref,  # (Bt, 1, Lq)   f32, 1 = valid query token
    cw_ref,     # (1, H)        c_weight as a row
    qw_ref,     # (1, H)        q_weight as a row
    cqw_ref,    # (1, H)        cq_weight as a row
    out_ref,    # (Bt, Lc, 4H)
):
    f32 = jnp.float32
    NEG = f32(-1e30)
    Bt, Lc, H = c_ref.shape
    Lq = q_ref.shape[1]

    c = c_ref[...]                 # keep native dtype for the MXU
    q = q_ref[...]
    cmask = cmask_ref[...]
    qmask = qmask_ref[...]

    cw = jnp.broadcast_to(cw_ref[...][None], (Bt, 1, H)).astype(c.dtype)
    qw = jnp.broadcast_to(qw_ref[...][None], (Bt, 1, H)).astype(c.dtype)
    cqw = cqw_ref[...].astype(c.dtype)            # (1, H) broadcasts over (Bt, Lc, H)

    # ---- similarity matrix: all contractions on the MXU, f32 accumulation ----
    s = jnp.einsum('bch,bqh->bcq', c * cqw, q, preferred_element_type=f32)   # (Bt,Lc,Lq)
    s += jnp.einsum('bch,bxh->bcx', c, cw, preferred_element_type=f32)       # + (Bt,Lc,1)
    s += jnp.einsum('bxh,bqh->bxq', qw, q, preferred_element_type=f32)       # + (Bt,1,Lq)
    # (scalar bias intentionally dropped — exact no-op under both masked softmaxes)

    # ---- masked softmaxes (f32) ----------------------------------------------
    # context-to-query: softmax over the query axis (lanes)
    lg1 = jnp.where(qmask != 0, s, NEG)
    e1 = jnp.exp(lg1 - jnp.max(lg1, axis=2, keepdims=True))
    inv1 = pl.reciprocal(jnp.sum(e1, axis=2, keepdims=True), approx=False)   # (Bt,Lc,1)
    att1 = (e1 * inv1).astype(c.dtype)                                       # (Bt,Lc,Lq)

    # query-to-context: softmax over the context axis (sublanes); kept unnormalized
    # here — the 1/colsum is folded into the small (Lq, H) tensor below.
    lg2 = jnp.where(cmask != 0, s, NEG)
    e2 = jnp.exp(lg2 - jnp.max(lg2, axis=1, keepdims=True))                  # (Bt,Lc,Lq)
    inv2 = pl.reciprocal(jnp.sum(e2, axis=1, keepdims=True), approx=False)   # (Bt,1,Lq)

    # ---- attention applications on the MXU ------------------------------------
    a = jnp.einsum('bcq,bqh->bch', att1, q, preferred_element_type=f32)      # (Bt,Lc,H)

    # b = att1 @ (att2^T @ c)  — reassociated, no (Lc,Lc) intermediate.
    t = jnp.einsum('bcq,bch->bqh', e2.astype(c.dtype), c,
                   preferred_element_type=f32)                               # (Bt,Lq,H)
    t = (t * jnp.reshape(inv2, (Bt, Lq, 1))).astype(c.dtype)
    b = jnp.einsum('bcq,bqh->bch', att1, t, preferred_element_type=f32)      # (Bt,Lc,H)

    # ---- lane-dense output write ----------------------------------------------
    od = out_ref.dtype
    if H % 128 == 0:
        # Direct lane-aligned slice stores (no (Lc,4H) temporary).
        out_ref[:, :, 0 * H:1 * H] = c.astype(od)
        out_ref[:, :, 1 * H:2 * H] = a.astype(od)
        out_ref[:, :, 2 * H:3 * H] = (c * a).astype(od)
        out_ref[:, :, 3 * H:4 * H] = (c * b).astype(od)
    else:
        out_ref[...] = jnp.concatenate(
            [c.astype(od), a.astype(od), (c * a).astype(od), (c * b).astype(od)],
            axis=-1)


def _round_up(x, m):
    return ((x + m - 1) // m) * m


def _choose_block_b(B, Lc, Lq, H, itemsize):
    """Batch elements per grid step.

    Keep the rough per-step working set comfortably under ~24 MiB so the
    double-buffered pipeline fits v7x's 64 MiB physical VMEM per TensorCore
    (v5e/v6e have 128 MiB and simply get more headroom), and keep the grid
    length >= 2 when possible so both v7x TensorCores get work.
    """
    f32_tmp = 4 * (3 * Lc * Lq + 4 * Lc * H + 2 * Lq * H)            # s/e1/e2, a/b/c*a/c*b, t
    io = 2 * itemsize * (Lc * H + Lq * H + 4 * Lc * H + Lc + Lq)     # double-buffered tiles
    per_elem = f32_tmp + io
    budget = 24 * 1024 * 1024
    bt = budget // max(per_elem, 1)
    bt = max(1, min(8, int(bt)))
    bt = min(bt, B)
    if B >= 2:
        bt = min(bt, (B + 1) // 2)     # effective grid length >= 2
    return int(bt)


def bidaf_attention(c, q, c_mask, q_mask, params, *, block_b=None):
    """c: (B, Lc, H), q: (B, Lq, H), c_mask: (B, Lc), q_mask: (B, Lq) -> (B, Lc, 4H)."""
    B, Lc, H = c.shape
    Lq = q.shape[1]
    dtype = c.dtype

    # Lane/sublane padding: Lq is the lane axis of s/att1/att2, Lc the sublane axis.
    Lc_p = _round_up(Lc, 8)
    Lq_p = _round_up(Lq, 128)

    Bt = block_b if block_b is not None else _choose_block_b(
        B, Lc_p, Lq_p, H, jnp.dtype(dtype).itemsize)
    B_p = _round_up(B, Bt)

    c_p = jnp.pad(c, ((0, B_p - B), (0, Lc_p - Lc), (0, 0)))
    q_p = jnp.pad(q, ((0, B_p - B), (0, Lq_p - Lq), (0, 0)))
    cm = jnp.pad(c_mask.astype(jnp.float32),
                 ((0, B_p - B), (0, Lc_p - Lc))).reshape(B_p, Lc_p, 1)
    qm = jnp.pad(q_mask.astype(jnp.float32),
                 ((0, B_p - B), (0, Lq_p - Lq))).reshape(B_p, 1, Lq_p)

    cw = params["c_weight"].reshape(1, H).astype(dtype)
    qw = params["q_weight"].reshape(1, H).astype(dtype)
    cqw = params["cq_weight"].reshape(1, H).astype(dtype)
    # The scalar `bias` is not passed: it is an exact no-op under both masked softmaxes.

    out = pl.pallas_call(
        _bidaf_attention_kernel,
        out_shape=jax.ShapeDtypeStruct((B_p, Lc_p, 4 * H), dtype),
        grid=(B_p // Bt,),
        in_specs=[
            pl.BlockSpec((Bt, Lc_p, H), lambda bb: (bb, 0, 0)),
            pl.BlockSpec((Bt, Lq_p, H), lambda bb: (bb, 0, 0)),
            pl.BlockSpec((Bt, Lc_p, 1), lambda bb: (bb, 0, 0)),
            pl.BlockSpec((Bt, 1, Lq_p), lambda bb: (bb, 0, 0)),
            pl.BlockSpec((1, H), lambda bb: (0, 0)),
            pl.BlockSpec((1, H), lambda bb: (0, 0)),
            pl.BlockSpec((1, H), lambda bb: (0, 0)),
        ],
        out_specs=pl.BlockSpec((Bt, Lc_p, 4 * H), lambda bb: (bb, 0, 0)),
        compiler_params=pltpu.CompilerParams(
            dimension_semantics=("parallel",),
            vmem_limit_bytes=64 * 1024 * 1024,
        ),
    )(c_p, q_p, cm, qm, cw, qw, cqw)

    return out[:B, :Lc, :]


def init_params(key, hidden_size):
    """Deterministic synthetic parameters matching BiDAFAttention(hidden_size)."""
    H = hidden_size
    ks = jax.random.split(key, 3)

    def xavier(k, shape, fan_in, fan_out):
        limit = (6.0 / (fan_in + fan_out)) ** 0.5
        return jax.random.uniform(k, shape, jnp.float32, -limit, limit)

    return dict(
        c_weight=xavier(ks[0], (H, 1), H, 1),
        q_weight=xavier(ks[1], (H, 1), H, 1),
        cq_weight=xavier(ks[2], (1, 1, H), 1, H),
        bias=jnp.zeros((1,), jnp.float32),
    )


def reference_forward(c, q, c_mask, q_mask, params):
    """Pure-JAX reference mirroring the PyTorch forward (for correctness checking)."""
    cw = params["c_weight"]          # (H, 1)
    qw = params["q_weight"]          # (H, 1)
    cqw = params["cq_weight"]        # (1, 1, H)
    bias = params["bias"][0]

    hi = lax.Precision.HIGHEST
    s0 = jnp.matmul(c, cw, precision=hi)                                  # (B, Lc, 1)
    s1 = jnp.transpose(jnp.matmul(q, qw, precision=hi), (0, 2, 1))        # (B, 1, Lq)
    s2 = jnp.matmul(c * cqw, jnp.transpose(q, (0, 2, 1)), precision=hi)   # (B, Lc, Lq)
    s = s0 + s1 + s2 + bias

    cm = c_mask[:, :, None].astype(jnp.float32)
    qm = q_mask[:, None, :].astype(jnp.float32)

    def msoftmax(logits, mask, axis):
        ml = mask * logits + (1.0 - mask) * (-1e30)
        ml = ml - jnp.max(ml, axis=axis, keepdims=True)
        e = jnp.exp(ml)
        return e / jnp.sum(e, axis=axis, keepdims=True)

    s1p = msoftmax(s, qm, 2)
    s2p = msoftmax(s, cm, 1)
    a = jnp.matmul(s1p, q, precision=hi)
    b = jnp.matmul(jnp.matmul(s1p, jnp.transpose(s2p, (0, 2, 1)), precision=hi),
                   c, precision=hi)
    return jnp.concatenate([c, a, c * a, c * b], axis=2)


if __name__ == "__main__":
    B, Lc, Lq, H = 2, 16, 8, 32
    key = jax.random.PRNGKey(0)
    kc, kq, kp = jax.random.split(key, 3)

    c = jax.random.normal(kc, (B, Lc, H), jnp.float32)
    q = jax.random.normal(kq, (B, Lq, H), jnp.float32)
    c_len = jnp.array([Lc, 11], dtype=jnp.int32)
    q_len = jnp.array([Lq, 5], dtype=jnp.int32)
    c_mask = (jnp.arange(Lc)[None, :] < c_len[:, None]).astype(jnp.float32)
    q_mask = (jnp.arange(Lq)[None, :] < q_len[:, None]).astype(jnp.float32)

    params = init_params(kp, H)

    out = bidaf_attention(c, q, c_mask, q_mask, params)
    jax.block_until_ready(out)

    ref = reference_forward(c, q, c_mask, q_mask, params)
    assert out.shape == (B, Lc, 4 * H), f"bad output shape {out.shape}"
    assert jnp.allclose(out, ref, rtol=1e-4, atol=1e-4), "BiDAFAttention output mismatch"
    print("KERNEL_OK")
</pallas_src>

<mosaic_0001>
module attributes {stable_mosaic.version = 11 : i64} {
  func.func @_bidaf_attention_kernel(%arg0: i32, %arg1: memref<1x16x32xf32, #tpu.memory_space<vmem>>, %arg2: memref<1x128x32xf32, #tpu.memory_space<vmem>>, %arg3: memref<1x16x1xf32, #tpu.memory_space<vmem>>, %arg4: memref<1x1x128xf32, #tpu.memory_space<vmem>>, %arg5: memref<1x32xf32, #tpu.memory_space<vmem>>, %arg6: memref<1x32xf32, #tpu.memory_space<vmem>>, %arg7: memref<1x32xf32, #tpu.memory_space<vmem>>, %arg8: memref<1x16x128xf32, #tpu.memory_space<vmem>>) attributes {dimension_semantics = [#tpu.dimension_semantics<parallel>], iteration_bounds = array<i64: 2>, scalar_prefetch = 0 : i64, scratch_operands = 0 : i64, tpu.core_type = #tpu.core_type<tc>, window_params = [{transform_indices = @transform_0, window_bounds = array<i64: 1, 16, 32>}, {transform_indices = @transform_1, window_bounds = array<i64: 1, 128, 32>}, {transform_indices = @transform_2, window_bounds = array<i64: 1, 16, 1>}, {transform_indices = @transform_3, window_bounds = array<i64: 1, 1, 128>}, {pipeline_mode = #tpu.pipeline_mode<synchronous>, transform_indices = @transform_4, window_bounds = array<i64: 1, 32>}, {pipeline_mode = #tpu.pipeline_mode<synchronous>, transform_indices = @transform_5, window_bounds = array<i64: 1, 32>}, {pipeline_mode = #tpu.pipeline_mode<synchronous>, transform_indices = @transform_6, window_bounds = array<i64: 1, 32>}, {transform_indices = @transform_7, window_bounds = array<i64: 1, 16, 128>}]} {
    %c0 = arith.constant 0 : index
    %c0_0 = arith.constant 0 : index
    %c0_1 = arith.constant 0 : index
    %0 = vector.load %arg1[%c0, %c0_0, %c0_1] : memref<1x16x32xf32, #tpu.memory_space<vmem>>, vector<1x16x32xf32>
    %c0_2 = arith.constant 0 : index
    %c0_3 = arith.constant 0 : index
    %c0_4 = arith.constant 0 : index
    %1 = vector.load %arg2[%c0_2, %c0_3, %c0_4] : memref<1x128x32xf32, #tpu.memory_space<vmem>>, vector<1x128x32xf32>
    %c0_5 = arith.constant 0 : index
    %c0_6 = arith.constant 0 : index
    %c0_7 = arith.constant 0 : index
    %2 = vector.load %arg3[%c0_5, %c0_6, %c0_7] : memref<1x16x1xf32, #tpu.memory_space<vmem>>, vector<1x16x1xf32>
    %c0_8 = arith.constant 0 : index
    %c0_9 = arith.constant 0 : index
    %c0_10 = arith.constant 0 : index
    %3 = vector.load %arg4[%c0_8, %c0_9, %c0_10] : memref<1x1x128xf32, #tpu.memory_space<vmem>>, vector<1x1x128xf32>
    %c0_11 = arith.constant 0 : index
    %c0_12 = arith.constant 0 : index
    %4 = vector.load %arg5[%c0_11, %c0_12] : memref<1x32xf32, #tpu.memory_space<vmem>>, vector<1x32xf32>
    %5 = vector.shape_cast %4 : vector<1x32xf32> to vector<1x1x32xf32>
    %c0_13 = arith.constant 0 : index
    %c0_14 = arith.constant 0 : index
    %6 = vector.load %arg6[%c0_13, %c0_14] : memref<1x32xf32, #tpu.memory_space<vmem>>, vector<1x32xf32>
    %7 = vector.shape_cast %6 : vector<1x32xf32> to vector<1x1x32xf32>
    %c0_15 = arith.constant 0 : index
    %c0_16 = arith.constant 0 : index
    %8 = vector.load %arg7[%c0_15, %c0_16] : memref<1x32xf32, #tpu.memory_space<vmem>>, vector<1x32xf32>
    %9 = vector.shape_cast %8 : vector<1x32xf32> to vector<1x1x32xf32>
    %10 = vector.broadcast %9 : vector<1x1x32xf32> to vector<1x16x32xf32>
    %11 = arith.mulf %0, %10 : vector<1x16x32xf32>
    "tpu.trace_start"() <{level = 10 : i32, message = "bch,bqh->bcq"}> : () -> ()
    %cst = arith.constant dense<0.000000e+00> : vector<1x16x128xf32>
    %12 = tpu.matmul %11, %1, %cst {dimension_numbers = #tpu.dot_dimension_numbers<[2], [2], [1], [1], [0, 0, 0, 1, 1, 1], [0], [0]>} : vector<1x16x32xf32>, vector<1x128x32xf32>, vector<1x16x128xf32> -> vector<1x16x128xf32>
    "tpu.trace_stop"() : () -> ()
    "tpu.trace_start"() <{level = 10 : i32, message = "bch,bxh->bcx"}> : () -> ()
    %cst_17 = arith.constant dense<0.000000e+00> : vector<1x16x1xf32>
    %13 = tpu.matmul %0, %5, %cst_17 {dimension_numbers = #tpu.dot_dimension_numbers<[2], [2], [1], [1], [0, 0, 0, 1, 1, 1], [0], [0]>} : vector<1x16x32xf32>, vector<1x1x32xf32>, vector<1x16x1xf32> -> vector<1x16x1xf32>
    "tpu.trace_stop"() : () -> ()
    %14 = vector.broadcast %13 : vector<1x16x1xf32> to vector<1x16x128xf32>
    %15 = arith.addf %12, %14 : vector<1x16x128xf32>
    "tpu.trace_start"() <{level = 10 : i32, message = "bxh,bqh->bxq"}> : () -> ()
    %cst_18 = arith.constant dense<0.000000e+00> : vector<1x1x128xf32>
    %16 = tpu.matmul %7, %1, %cst_18 {dimension_numbers = #tpu.dot_dimension_numbers<[2], [2], [1], [1], [0, 0, 0, 1, 1, 1], [0], [0]>} : vector<1x1x32xf32>, vector<1x128x32xf32>, vector<1x1x128xf32> -> vector<1x1x128xf32>
    "tpu.trace_stop"() : () -> ()
    %17 = vector.broadcast %16 : vector<1x1x128xf32> to vector<1x16x128xf32>
    %18 = arith.addf %15, %17 : vector<1x16x128xf32>
    %cst_19 = arith.constant 0.000000e+00 : f32
    %19 = vector.broadcast %cst_19 : f32 to vector<1x1x128xf32>
    %20 = arith.cmpf one, %3, %19 : vector<1x1x128xf32>
    %cst_20 = arith.constant -1.000000e+30 : f32
    %21 = vector.shape_cast %20 : vector<1x1x128xi1> to vector<1x1x128xi1>
    %22 = vector.broadcast %21 : vector<1x1x128xi1> to vector<1x16x128xi1>
    %23 = vector.broadcast %cst_20 : f32 to vector<1x16x128xf32>
    %24 = arith.select %22, %18, %23 : vector<1x16x128xi1>, vector<1x16x128xf32>
    %cst_21 = arith.constant dense<0xFF800000> : vector<1x16xf32>
    %25 = vector.multi_reduction <maximumf>, %24, %cst_21 [2] : vector<1x16x128xf32> to vector<1x16xf32>
    %26 = vector.shape_cast %25 : vector<1x16xf32> to vector<1x16x1xf32>
    %27 = vector.broadcast %26 : vector<1x16x1xf32> to vector<1x16x128xf32>
    %28 = arith.subf %24, %27 : vector<1x16x128xf32>
    %29 = math.exp %28 : vector<1x16x128xf32>
    %cst_22 = arith.constant dense<0.000000e+00> : vector<1x16xf32>
    %30 = vector.multi_reduction <add>, %29, %cst_22 [2] : vector<1x16x128xf32> to vector<1x16xf32>
    %31 = vector.shape_cast %30 : vector<1x16xf32> to vector<1x16x1xf32>
    %32 = tpu.reciprocal %31 : vector<1x16x1xf32> -> vector<1x16x1xf32>
    %33 = vector.broadcast %32 : vector<1x16x1xf32> to vector<1x16x128xf32>
    %34 = arith.mulf %29, %33 : vector<1x16x128xf32>
    %cst_23 = arith.constant 0.000000e+00 : f32
    %35 = vector.broadcast %cst_23 : f32 to vector<1x16x1xf32>
    %36 = arith.cmpf one, %2, %35 : vector<1x16x1xf32>
    %cst_24 = arith.constant -1.000000e+30 : f32
    %37 = vector.shape_cast %36 : vector<1x16x1xi1> to vector<1x16x1xi1>
    %38 = vector.broadcast %37 : vector<1x16x1xi1> to vector<1x16x128xi1>
    %39 = vector.broadcast %cst_24 : f32 to vector<1x16x128xf32>
    %40 = arith.select %38, %18, %39 : vector<1x16x128xi1>, vector<1x16x128xf32>
    %cst_25 = arith.constant dense<0xFF800000> : vector<1x128xf32>
    %41 = vector.multi_reduction <maximumf>, %40, %cst_25 [1] : vector<1x16x128xf32> to vector<1x128xf32>
    %42 = vector.shape_cast %41 : vector<1x128xf32> to vector<1x1x128xf32>
    %43 = vector.broadcast %42 : vector<1x1x128xf32> to vector<1x16x128xf32>
    %44 = arith.subf %40, %43 : vector<1x16x128xf32>
    %45 = math.exp %44 : vector<1x16x128xf32>
    %cst_26 = arith.constant dense<0.000000e+00> : vector<1x128xf32>
    %46 = vector.multi_reduction <add>, %45, %cst_26 [1] : vector<1x16x128xf32> to vector<1x128xf32>
    %47 = vector.shape_cast %46 : vector<1x128xf32> to vector<1x1x128xf32>
    %48 = tpu.reciprocal %47 : vector<1x1x128xf32> -> vector<1x1x128xf32>
    "tpu.trace_start"() <{level = 10 : i32, message = "bcq,bqh->bch"}> : () -> ()
    %cst_27 = arith.constant dense<0.000000e+00> : vector<1x16x32xf32>
    %49 = tpu.matmul %34, %1, %cst_27 {dimension_numbers = #tpu.dot_dimension_numbers<[2], [1], [1], [2], [0, 0, 0, 1, 1, 2], [0], [0]>} : vector<1x16x128xf32>, vector<1x128x32xf32>, vector<1x16x32xf32> -> vector<1x16x32xf32>
    "tpu.trace_stop"() : () -> ()
    "tpu.trace_start"() <{level = 10 : i32, message = "bcq,bch->bqh"}> : () -> ()
    %cst_28 = arith.constant dense<0.000000e+00> : vector<1x128x32xf32>
    %50 = tpu.matmul %45, %0, %cst_28 {dimension_numbers = #tpu.dot_dimension_numbers<[1], [1], [2], [2], [0, 0, 0, 2, 1, 2], [0], [0]>} : vector<1x16x128xf32>, vector<1x16x32xf32>, vector<1x128x32xf32> -> vector<1x128x32xf32>
    "tpu.trace_stop"() : () -> ()
    %51 = vector.shape_cast %48 : vector<1x1x128xf32> to vector<1x128x1xf32>
    %52 = vector.broadcast %51 : vector<1x128x1xf32> to vector<1x128x32xf32>
    %53 = arith.mulf %50, %52 : vector<1x128x32xf32>
    "tpu.trace_start"() <{level = 10 : i32, message = "bcq,bqh->bch"}> : () -> ()
    %cst_29 = arith.constant dense<0.000000e+00> : vector<1x16x32xf32>
    %54 = tpu.matmul %34, %53, %cst_29 {dimension_numbers = #tpu.dot_dimension_numbers<[2], [1], [1], [2], [0, 0, 0, 1, 1, 2], [0], [0]>} : vector<1x16x128xf32>, vector<1x128x32xf32>, vector<1x16x32xf32> -> vector<1x16x32xf32>
    "tpu.trace_stop"() : () -> ()
    %55 = arith.mulf %0, %49 : vector<1x16x32xf32>
    %56 = arith.mulf %0, %54 : vector<1x16x32xf32>
    %57 = tpu.concatenate %0, %49, %55, %56 in 2 : vector<1x16x32xf32>, vector<1x16x32xf32>, vector<1x16x32xf32>, vector<1x16x32xf32> -> vector<1x16x128xf32>
    %c0_30 = arith.constant 0 : index
    %c0_31 = arith.constant 0 : index
    %c0_32 = arith.constant 0 : index
    %58 = vector.load %arg8[%c0_30, %c0_31, %c0_32] : memref<1x16x128xf32, #tpu.memory_space<vmem>>, vector<1x16x128xf32>
    tpu.vector_store %arg8[%c0_30, %c0_31, %c0_32], %57 {strides = array<i32>} : memref<1x16x128xf32, #tpu.memory_space<vmem>>, vector<1x16x128xf32>,
    return
  }
  func.func @transform_0(%arg0: i32) -> (i32, i32, i32) {
    %c0_i32 = arith.constant 0 : i32
    %c0_i32_0 = arith.constant 0 : i32
    %c0_i32_1 = arith.constant 0 : i32
    return %arg0, %c0_i32, %c0_i32_0 : i32, i32, i32
  }
  func.func @transform_1(%arg0: i32) -> (i32, i32, i32) {
    %c0_i32 = arith.constant 0 : i32
    %c0_i32_0 = arith.constant 0 : i32
    %c0_i32_1 = arith.constant 0 : i32
    return %arg0, %c0_i32, %c0_i32_0 : i32, i32, i32
  }
  func.func @transform_2(%arg0: i32) -> (i32, i32, i32) {
    %c0_i32 = arith.constant 0 : i32
    %c0_i32_0 = arith.constant 0 : i32
    %c0_i32_1 = arith.constant 0 : i32
    return %arg0, %c0_i32, %c0_i32_0 : i32, i32, i32
  }
  func.func @transform_3(%arg0: i32) -> (i32, i32, i32) {
    %c0_i32 = arith.constant 0 : i32
    %c0_i32_0 = arith.constant 0 : i32
    %c0_i32_1 = arith.constant 0 : i32
    return %arg0, %c0_i32, %c0_i32_0 : i32, i32, i32
  }
  func.func @transform_4(%arg0: i32) -> (i32, i32) {
    %c0_i32 = arith.constant 0 : i32
    %c0_i32_0 = arith.constant 0 : i32
    %c0_i32_1 = arith.constant 0 : i32
    return %c0_i32, %c0_i32_0 : i32, i32
  }
  func.func @transform_5(%arg0: i32) -> (i32, i32) {
    %c0_i32 = arith.constant 0 : i32
    %c0_i32_0 = arith.constant 0 : i32
    %c0_i32_1 = arith.constant 0 : i32
    return %c0_i32, %c0_i32_0 : i32, i32
  }
  func.func @transform_6(%arg0: i32) -> (i32, i32) {
    %c0_i32 = arith.constant 0 : i32
    %c0_i32_0 = arith.constant 0 : i32
    %c0_i32_1 = arith.constant 0 : i32
    return %c0_i32, %c0_i32_0 : i32, i32
  }
  func.func @transform_7(%arg0: i32) -> (i32, i32, i32) {
    %c0_i32 = arith.constant 0 : i32
    %c0_i32_0 = arith.constant 0 : i32
    %c0_i32_1 = arith.constant 0 : i32
    return %arg0, %c0_i32, %c0_i32_0 : i32, i32, i32
  }
}

</mosaic_0001>

<llo_original>
// kernel: tpu_custom_call.1
$region0: #{tpu_custom_call.1}
  #allocation0 [shape = 'u32[]', space=smem, size = 0x4, offset = 0x4, fixed_abs, tag = 'smem constant byte address 0x4 - core index']
  #allocation1 [shape = 'u32[144,128]{1,0:T(1,128)}', space=vmem, size = 0x12000, scoped, tag = 'internal scratch']
  %s0 = inlined_call_operand.vmem [shape: f32[2,16,32], index: 0, kind: input, shape index: {}]
  %s1 = inlined_call_operand.vmem [shape: f32[2,128,32], index: 1, kind: input, shape index: {}]
  %s2 = inlined_call_operand.vmem [shape: f32[2,16,1], index: 2, kind: input, shape index: {}]
  %s3 = inlined_call_operand.vmem [shape: f32[2,1,128], index: 3, kind: input, shape index: {}]
  %s4 = inlined_call_operand.vmem [shape: f32[1,32], index: 4, kind: input, shape index: {}]
  %s5 = inlined_call_operand.vmem [shape: f32[1,32], index: 5, kind: input, shape index: {}]
  %s6 = inlined_call_operand.vmem [shape: f32[1,32], index: 6, kind: input, shape index: {}]
  %s7 = inlined_call_operand.hbm [shape: f32[2,16,128], index: 7, kind: output, shape index: {}]
  %s8 = sld [smem:[#allocation0]]
  $region61: #{tpu_custom_call.1} parent=0
    _
  %s10 = ssub.s32 1, %s8
  %s11 = scalar_select 0, %s10, %s8
  $region1: #{tpu_custom_call.1} parent=0
    #allocation2 [shape = 'u8[16384]{0}', space=vmem, size = 0x4000, scoped, tag = 'output window, operand 0']
    #allocation3 [shape = 's32[2]{0}', space=sflag, size = 0x8, scoped, tag = 'scoped memory for tpu_custom_call.1']
    %12 = vsyncpa [#allocation3], 0
    %s13 = scalar_lea.sflag [#allocation3], 1
    %14 = vsyncpa %s13, 0
    loop: start=0, step=1, limit=4
    $region2: #{tpu_custom_call.1} parent=1 // loop_pre_header
      _
    $region3: #{tpu_custom_call.1} parent=1 // loop_header
      %s16 = sphi 0, %s20
      %p17 = scmp.ge.s32.totalorder %s16, 4
      %s26 = sphi 0, %s28
      %s29 = sphi 0, %s26
      %s30 = sphi 0, %s29
      %s46 = sphi 0, %s30
      %s52 = sphi 0, %s54
      %s55 = sphi 0, %s52
      %s56 = sphi 0, %s55
      %s72 = sphi 0, %s56
      %s78 = sphi 0, %s80
      %s81 = sphi 0, %s78
      %s82 = sphi 0, %s81
      %s98 = sphi 0, %s82
      %s104 = sphi 0, %s106
      %s107 = sphi 0, %s104
      %s108 = sphi 0, %s107
      %s124 = sphi 0, %s108
      %s128 = sphi 0, %s128
      %s130 = sphi 0, %s128
      %s131 = sphi 0, %s130
      %s145 = sphi 0, %s131
      %s149 = sphi 0, %s149
      %s151 = sphi 0, %s149
      %s152 = sphi 0, %s151
      %s166 = sphi 0, %s152
      %s170 = sphi 0, %s170
      %s172 = sphi 0, %s170
      %s173 = sphi 0, %s172
      %s187 = sphi 0, %s173
      %s193 = sphi 0, %s195
      %s196 = sphi 0, %s193
      %s197 = sphi 0, %s196
      %s213 = sphi 0, %s197
    $region4: #{tpu_custom_call.1} parent=1 // loop_header_branch
      %19 = sbr.rel (%p17) target = $region8
    $region5: #{tpu_custom_call.1} parent=1 // loop_body
      %s21 = ssub.s32 %s16, 1
      %s22 = ssub.s32 %s16, 2
      %s23 = sadd.s32 %s16, 1
      %s24 = ssub.s32 %s16, %s23
      %p25 = scmp.eq.s32.totalorder %s24, 0
      %s27 = sadd.s32 %s26, 1
      %s28 = scalar_select %p25, %s26, %s27
      %p31 = pneg %p25
      %p32 = scmp.eq.s32.totalorder %s16, 1
      %p33 = por %p31, %p32
      %p34 = scmp.ne.s32.totalorder %s26, %s29
      %p35 = scmp.eq.s32.totalorder %s16, 0
      %p36 = por %p34, %p35
      %p37 = scmp.ne.s32.totalorder %s26, %s29
      %p38 = scmp.eq.s32.totalorder %s21, 1
      %p39 = por %p37, %p38
      %p40 = scmp.ne.s32.totalorder %s29, %s30
      %p41 = scmp.eq.s32.totalorder %s21, 0
      %p42 = por %p40, %p41
      %p43 = scmp.ne.s32.totalorder %s29, %s30
      %p44 = scmp.eq.s32.totalorder %s22, 1
      %p45 = por %p43, %p44
      %p47 = scmp.ne.s32.totalorder %s30, %s46
      %p48 = scmp.eq.s32.totalorder %s22, 0
      %p49 = por %p47, %p48
      %s50 = ssub.s32 %s16, %s23
      %p51 = scmp.eq.s32.totalorder %s50, 0
      %s53 = sadd.s32 %s52, 1
      %s54 = scalar_select %p51, %s52, %s53
      %p57 = pneg %p51
      %p58 = scmp.eq.s32.totalorder %s16, 1
      %p59 = por %p57, %p58
      %p60 = scmp.ne.s32.totalorder %s52, %s55
      %p61 = scmp.eq.s32.totalorder %s16, 0
      %p62 = por %p60, %p61
      %p63 = scmp.ne.s32.totalorder %s52, %s55
      %p64 = scmp.eq.s32.totalorder %s21, 1
      %p65 = por %p63, %p64
      %p66 = scmp.ne.s32.totalorder %s55, %s56
      %p67 = scmp.eq.s32.totalorder %s21, 0
      %p68 = por %p66, %p67
      %p69 = scmp.ne.s32.totalorder %s55, %s56
      %p70 = scmp.eq.s32.totalorder %s22, 1
      %p71 = por %p69, %p70
      %p73 = scmp.ne.s32.totalorder %s56, %s72
      %p74 = scmp.eq.s32.totalorder %s22, 0
      %p75 = por %p73, %p74
      %s76 = ssub.s32 %s16, %s23
      %p77 = scmp.eq.s32.totalorder %s76, 0
      %s79 = sadd.s32 %s78, 1
      %s80 = scalar_select %p77, %s78, %s79
      %p83 = pneg %p77
      %p84 = scmp.eq.s32.totalorder %s16, 1
      %p85 = por %p83, %p84
      %p86 = scmp.ne.s32.totalorder %s78, %s81
      %p87 = scmp.eq.s32.totalorder %s16, 0
      %p88 = por %p86, %p87
      %p89 = scmp.ne.s32.totalorder %s78, %s81
      %p90 = scmp.eq.s32.totalorder %s21, 1
      %p91 = por %p89, %p90
      %p92 = scmp.ne.s32.totalorder %s81, %s82
      %p93 = scmp.eq.s32.totalorder %s21, 0
      %p94 = por %p92, %p93
      %p95 = scmp.ne.s32.totalorder %s81, %s82
      %p96 = scmp.eq.s32.totalorder %s22, 1
      %p97 = por %p95, %p96
      %p99 = scmp.ne.s32.totalorder %s82, %s98
      %p100 = scmp.eq.s32.totalorder %s22, 0
      %p101 = por %p99, %p100
      %s102 = ssub.s32 %s16, %s23
      %p103 = scmp.eq.s32.totalorder %s102, 0
      %s105 = sadd.s32 %s104, 1
      %s106 = scalar_select %p103, %s104, %s105
      %p109 = pneg %p103
      %p110 = scmp.eq.s32.totalorder %s16, 1
      %p111 = por %p109, %p110
      %p112 = scmp.ne.s32.totalorder %s104, %s107
      %p113 = scmp.eq.s32.totalorder %s16, 0
      %p114 = por %p112, %p113
      %p115 = scmp.ne.s32.totalorder %s104, %s107
      %p116 = scmp.eq.s32.totalorder %s21, 1
      %p117 = por %p115, %p116
      %p118 = scmp.ne.s32.totalorder %s107, %s108
      %p119 = scmp.eq.s32.totalorder %s21, 0
      %p120 = por %p118, %p119
      %p121 = scmp.ne.s32.totalorder %s107, %s108
      %p122 = scmp.eq.s32.totalorder %s22, 1
      %p123 = por %p121, %p122
      %p125 = scmp.ne.s32.totalorder %s108, %s124
      %p126 = scmp.eq.s32.totalorder %s22, 0
      %p127 = por %p125, %p126
      %s129 = sadd.s32 %s128, 1
      %p132 = scmp.eq.s32.totalorder %s16, 1
      %p133 = scmp.ne.s32.totalorder %s128, %s130
      %p134 = scmp.eq.s32.totalorder %s16, 0
      %p135 = por %p133, %p134
      %p136 = scmp.ne.s32.totalorder %s128, %s130
      %p137 = scmp.eq.s32.totalorder %s21, 1
      %p138 = por %p136, %p137
      %p139 = scmp.ne.s32.totalorder %s130, %s131
      %p140 = scmp.eq.s32.totalorder %s21, 0
      %p141 = por %p139, %p140
      %p142 = scmp.ne.s32.totalorder %s130, %s131
      %p143 = scmp.eq.s32.totalorder %s22, 1
      %p144 = por %p142, %p143
      %p146 = scmp.ne.s32.totalorder %s131, %s145
      %p147 = scmp.eq.s32.totalorder %s22, 0
      %p148 = por %p146, %p147
      %s150 = sadd.s32 %s149, 1
      %p153 = scmp.eq.s32.totalorder %s16, 1
      %p154 = scmp.ne.s32.totalorder %s149, %s151
      %p155 = scmp.eq.s32.totalorder %s16, 0
      %p156 = por %p154, %p155
      %p157 = scmp.ne.s32.totalorder %s149, %s151
      %p158 = scmp.eq.s32.totalorder %s21, 1
      %p159 = por %p157, %p158
      %p160 = scmp.ne.s32.totalorder %s151, %s152
      %p161 = scmp.eq.s32.totalorder %s21, 0
      %p162 = por %p160, %p161
      %p163 = scmp.ne.s32.totalorder %s151, %s152
      %p164 = scmp.eq.s32.totalorder %s22, 1
      %p165 = por %p163, %p164
      %p167 = scmp.ne.s32.totalorder %s152, %s166
      %p168 = scmp.eq.s32.totalorder %s22, 0
      %p169 = por %p167, %p168
      %s171 = sadd.s32 %s170, 1
      %p174 = scmp.eq.s32.totalorder %s16, 1
      %p175 = scmp.ne.s32.totalorder %s170, %s172
      %p176 = scmp.eq.s32.totalorder %s16, 0
      %p177 = por %p175, %p176
      %p178 = scmp.ne.s32.totalorder %s170, %s172
      %p179 = scmp.eq.s32.totalorder %s21, 1
      %p180 = por %p178, %p179
      %p181 = scmp.ne.s32.totalorder %s172, %s173
      %p182 = scmp.eq.s32.totalorder %s21, 0
      %p183 = por %p181, %p182
      %p184 = scmp.ne.s32.totalorder %s172, %s173
      %p185 = scmp.eq.s32.totalorder %s22, 1
      %p186 = por %p184, %p185
      %p188 = scmp.ne.s32.totalorder %s173, %s187
      %p189 = scmp.eq.s32.totalorder %s22, 0
      %p190 = por %p188, %p189
      %s191 = ssub.s32 %s16, %s23
      %p192 = scmp.eq.s32.totalorder %s191, 0
      %s194 = sadd.s32 %s193, 1
      %s195 = scalar_select %p192, %s193, %s194
      %p198 = pneg %p192
      %p199 = scmp.eq.s32.totalorder %s16, 1
      %p200 = por %p198, %p199
      %p201 = scmp.ne.s32.totalorder %s193, %s196
      %p202 = scmp.eq.s32.totalorder %s16, 0
      %p203 = por %p201, %p202
      %p204 = scmp.ne.s32.totalorder %s193, %s196
      %p205 = scmp.eq.s32.totalorder %s21, 1
      %p206 = por %p204, %p205
      %p207 = scmp.ne.s32.totalorder %s196, %s197
      %p208 = scmp.eq.s32.totalorder %s21, 0
      %p209 = por %p207, %p208
      %p210 = scmp.ne.s32.totalorder %s196, %s197
      %p211 = scmp.eq.s32.totalorder %s22, 1
      %p212 = por %p210, %p211
      %p214 = scmp.ne.s32.totalorder %s197, %s213
      %p215 = scmp.eq.s32.totalorder %s22, 0
      %p216 = por %p214, %p215
      %p217 = scmp.le.s32.totalorder 1, %s16
      %p218 = scmp.lt.s32.totalorder %s16, 3
      %p219 = pnand %p217, %p218
      %p220 = pneg %p219
      // Predicated region
      $region9: #{tpu_custom_call.1} parent=5 // pred_check
        _
      $region10: #{tpu_custom_call.1} parent=5 // pred_check_branch
        %222 = sbr.rel (%p219) target = $region12
      $region11: #{tpu_custom_call.1} parent=5 // pred_region
        %s223 = ssub.s32 %s16, 1
        // Predicated region
        $region13: #{tpu_custom_call.1} parent=11 // pred_check
          %p224 = pneg %p141
        $region14: #{tpu_custom_call.1} parent=11 // pred_check_branch
          %226 = sbr.rel (%p224) target = $region16
        $region15: #{tpu_custom_call.1} parent=11 // pred_region
          _
        $region16: #{tpu_custom_call.1} parent=11 // pred_fallthru
          _
        // Predicated region
        $region17: #{tpu_custom_call.1} parent=11 // pred_check
          %p227 = pneg %p162
        $region18: #{tpu_custom_call.1} parent=11 // pred_check_branch
          %229 = sbr.rel (%p227) target = $region20
        $region19: #{tpu_custom_call.1} parent=11 // pred_region
          _
        $region20: #{tpu_custom_call.1} parent=11 // pred_fallthru
          _
        // Predicated region
        $region21: #{tpu_custom_call.1} parent=11 // pred_check
          %p230 = pneg %p183
        $region22: #{tpu_custom_call.1} parent=11 // pred_check_branch
          %232 = sbr.rel (%p230) target = $region24
        $region23: #{tpu_custom_call.1} parent=11 // pred_region
          _
        $region24: #{tpu_custom_call.1} parent=11 // pred_fallthru
          _
      $region12: #{tpu_custom_call.1} parent=5 // pred_fallthru
        _
      %p233 = scmp.lt.s32.totalorder %s16, 2
      // Predicated region
      $region25: #{tpu_custom_call.1} parent=5 // pred_check
        %p234 = pneg %p233
      $region26: #{tpu_custom_call.1} parent=5 // pred_check_branch
        %236 = sbr.rel (%p234) target = $region28
      $region27: #{tpu_custom_call.1} parent=5 // pred_region
        // Predicated region
        $region29: #{tpu_custom_call.1} parent=27 // pred_check
          %p237 = pneg %p36
        $region30: #{tpu_custom_call.1} parent=27 // pred_check_branch
          %239 = sbr.rel (%p237) target = $region32
        $region31: #{tpu_custom_call.1} parent=27 // pred_region
          %p240 = scmp.lt.s32.totalorder %s16, 1
          %s241 = scalar_select %p240, %s16, 1
          %s242 = smul.addr %s241, 2
          %s243 = smul.addr %s242, 8
          %s244 = scalar_lea.vmem %s0, %s243
        $region32: #{tpu_custom_call.1} parent=27 // pred_fallthru
          _
        // Predicated region
        $region33: #{tpu_custom_call.1} parent=27 // pred_check
          %p245 = pneg %p62
        $region34: #{tpu_custom_call.1} parent=27 // pred_check_branch
          %247 = sbr.rel (%p245) target = $region36
        $region35: #{tpu_custom_call.1} parent=27 // pred_region
          %p248 = scmp.lt.s32.totalorder %s16, 1
          %s249 = scalar_select %p248, %s16, 1
          %s250 = smul.addr %s249, 16
          %s251 = smul.addr %s250, 8
          %s252 = scalar_lea.vmem %s1, %s251
        $region36: #{tpu_custom_call.1} parent=27 // pred_fallthru
          _
        // Predicated region
        $region37: #{tpu_custom_call.1} parent=27 // pred_check
          %p253 = pneg %p88
        $region38: #{tpu_custom_call.1} parent=27 // pred_check_branch
          %255 = sbr.rel (%p253) target = $region40
        $region39: #{tpu_custom_call.1} parent=27 // pred_region
          %p256 = scmp.lt.s32.totalorder %s16, 1
          %s257 = scalar_select %p256, %s16, 1
          %s258 = smul.addr %s257, 2
          %s259 = smul.addr %s258, 8
          %s260 = scalar_lea.vmem %s2, %s259
        $region40: #{tpu_custom_call.1} parent=27 // pred_fallthru
          _
        // Predicated region
        $region41: #{tpu_custom_call.1} parent=27 // pred_check
          %p261 = pneg %p114
        $region42: #{tpu_custom_call.1} parent=27 // pred_check_branch
          %263 = sbr.rel (%p261) target = $region44
        $region43: #{tpu_custom_call.1} parent=27 // pred_region
          %p264 = scmp.lt.s32.totalorder %s16, 1
          %s265 = scalar_select %p264, %s16, 1
          %s266 = scalar_lea.vmem %s3, %s265
        $region44: #{tpu_custom_call.1} parent=27 // pred_fallthru
          _
      $region28: #{tpu_custom_call.1} parent=5 // pred_fallthru
        _
      %p267 = scmp.le.s32.totalorder 1, %s16
      %p268 = scmp.lt.s32.totalorder %s16, 3
      %p269 = pnand %p267, %p268
      %p270 = pneg %p269
      // Predicated region
      $region45: #{tpu_custom_call.1} parent=5 // pred_check
        _
      $region46: #{tpu_custom_call.1} parent=5 // pred_check_branch
        %272 = sbr.rel (%p269) target = $region48
      $region47: #{tpu_custom_call.1} parent=5 // pred_region
        %s273 = ssub.s32 %s16, 1
        %p274 = scmp.lt.s32.totalorder %s21, 1
        %s275 = scalar_select %p274, %s21, 1
        %s276 = smul.addr %s275, 2
        %s277 = smul.addr %s276, 8
        %s278 = scalar_lea.vmem %s0, %s277
        %p279 = pneg %p42
        %p280 = pneg %p39
        %p281 = scmp.lt.s32.totalorder %s21, 1
        %s282 = scalar_select %p281, %s21, 1
        %s283 = smul.addr %s282, 16
        %s284 = smul.addr %s283, 8
        %s285 = scalar_lea.vmem %s1, %s284
        %p286 = pneg %p68
        %p287 = pneg %p65
        %p288 = scmp.lt.s32.totalorder %s21, 1
        %s289 = scalar_select %p288, %s21, 1
        %s290 = smul.addr %s289, 2
        %s291 = smul.addr %s290, 8
        %s292 = scalar_lea.vmem %s2, %s291
        %p293 = pneg %p94
        %p294 = pneg %p91
        %p295 = scmp.lt.s32.totalorder %s21, 1
        %s296 = scalar_select %p295, %s21, 1
        %s297 = scalar_lea.vmem %s3, %s296
        %p298 = pneg %p120
        %p299 = pneg %p117
        %p300 = pneg %p141
        %p301 = pneg %p138
        %p302 = pneg %p162
        %p303 = pneg %p159
        %p304 = pneg %p183
        %p305 = pneg %p180
        %p306 = pneg %p209
        %p307 = pneg %p206
        %s308 = sand.u32 %s196, 1
        %s309 = scalar_lea.sflag [#allocation3], %s308
        %s310 = sand.u32 %s196, 1
        %s311 = smul.addr %s310, 16
        %s312 = scalar_lea.vmem [#allocation2], %s311
        %p313 = scmp.lt.s32.totalorder %s21, 1
        %s314 = scalar_select %p313, %s21, 1
        %s315 = smul.addr %s314, 2
        %s316 = smul.addr %s315, 8
        %s317 = scalar_lea.vmem %s0, %s316
        %p318 = scmp.lt.s32.totalorder %s21, 1
        %s319 = scalar_select %p318, %s21, 1
        %s320 = smul.addr %s319, 16
        %s321 = smul.addr %s320, 8
        %s322 = scalar_lea.vmem %s1, %s321
        %p323 = scmp.lt.s32.totalorder %s21, 1
        %s324 = scalar_select %p323, %s21, 1
        %s325 = smul.addr %s324, 2
        %s326 = smul.addr %s325, 8
        %s327 = scalar_lea.vmem %s2, %s326
        %p328 = scmp.lt.s32.totalorder %s21, 1
        %s329 = scalar_select %p328, %s21, 1
        %s330 = scalar_lea.vmem %s3, %s329
        %v331 = vld [vmem:[%s317] sm:$0xff]
        %v332 = vld [vmem:[%s317 + $0x8] sm:$0xff]
        %v333 = vld [vmem:[%s322] sm:$0xff]
        %v334 = vld [vmem:[%s322 + $0x8] sm:$0xff]
        %v335 = vld [vmem:[%s322 + $0x10] sm:$0xff]
        %v336 = vld [vmem:[%s322 + $0x18] sm:$0xff]
        %v337 = vld [vmem:[%s322 + $0x20] sm:$0xff]
        %v338 = vld [vmem:[%s322 + $0x28] sm:$0xff]
        %v339 = vld [vmem:[%s322 + $0x30] sm:$0xff]
        %v340 = vld [vmem:[%s322 + $0x38] sm:$0xff]
        %v341 = vld [vmem:[%s322 + $0x40] sm:$0xff]
        %v342 = vld [vmem:[%s322 + $0x48] sm:$0xff]
        %v343 = vld [vmem:[%s322 + $0x50] sm:$0xff]
        %v344 = vld [vmem:[%s322 + $0x58] sm:$0xff]
        %v345 = vld [vmem:[%s322 + $0x60] sm:$0xff]
        %v346 = vld [vmem:[%s322 + $0x68] sm:$0xff]
        %v347 = vld [vmem:[%s322 + $0x70] sm:$0xff]
        %v348 = vld [vmem:[%s322 + $0x78] sm:$0xff]
        %v349 = vld [vmem:[%s327] sm:$0xff]
        %v350 = vld [vmem:[%s327 + $0x8] sm:$0xff]
        %v351 = vld [vmem:[%s330] sm:$0x1]
        %v352 = vld [vmem:[%s4] sm:$0x1]
        %v353 = vld [vmem:[%s5] sm:$0x1]
        %v354 = vld [vmem:[%s6] sm:$0x1]
        %v356 = vlaneseq
        %v357 = vshrl.u32 %v356, 7
        %v358 = vsub.s32 0, %v357
        %v359 = vrot.slane %v354, %v358
        %v361 = vmul.f32 %v331, %v359
        %v362 = vmul.f32 %v332, %v359
        %v364 = vlaneseq
        %v365 = vshrl.u32 %v364, 7
        %v366 = vsub.s32 0, %v365
        %v367 = vrot.slane %v352, %v366
        %v369 = vmul.f32 %v331, %v367
        %v370 = vmul.f32 %v332, %v367
        %vm371 = vcmask 261120
        %v372 = vsel %vm371, %v369, 0.0
        %373 = vadd.xlane.f32.xlu0 %v372
        %v374 = vpop.xlane.xlu0 %373
        %v375 = vsel %vm371, %v370, 0.0
        %376 = vadd.xlane.f32.xlu0 %v375
        %v377 = vpop.xlane.xlu0 %376
        %v379 = vsel %vm371, %v361, 0
        %v382 = vsel %vm371, %v362, 0
        %v385 = vsel %vm371, %v333, 0
        %v388 = vsel %vm371, %v334, 0
        %v391 = vsel %vm371, %v335, 0
        %v394 = vsel %vm371, %v336, 0
        %v397 = vsel %vm371, %v337, 0
        %v400 = vsel %vm371, %v338, 0
        %v403 = vsel %vm371, %v339, 0
        %v406 = vsel %vm371, %v340, 0
        %v409 = vsel %vm371, %v341, 0
        %v412 = vsel %vm371, %v342, 0
        %v415 = vsel %vm371, %v343, 0
        %v418 = vsel %vm371, %v344, 0
        %v421 = vsel %vm371, %v345, 0
        %v424 = vsel %vm371, %v346, 0
        %v427 = vsel %vm371, %v347, 0
        %v430 = vsel %vm371, %v348, 0
        %432 = vmatprep.subr.mxu0 0.0
        %433 = vmatpush1.xpose.msra.mxu0 %v430
        %434 = vmatprep.subr.mxu0 0.0
        %435 = vmatpush1.xpose.msra.mxu0 %v427
        %436 = vmatprep.subr.mxu0 0.0
        %437 = vmatpush1.xpose.msra.mxu0 %v424
        %438 = vmatprep.subr.mxu0 0.0
        %439 = vmatpush1.xpose.msra.mxu0 %v421
        %440 = vmatprep.subr.mxu0 0.0
        %441 = vmatpush1.xpose.msra.mxu0 %v418
        %442 = vmatprep.subr.mxu0 0.0
        %443 = vmatpush1.xpose.msra.mxu0 %v415
        %444 = vmatprep.subr.mxu0 0.0
        %445 = vmatpush1.xpose.msra.mxu0 %v412
        %446 = vmatprep.subr.mxu0 0.0
        %447 = vmatpush1.xpose.msra.mxu0 %v409
        %448 = vmatprep.subr.mxu0 0.0
        %449 = vmatpush1.xpose.msra.mxu0 %v406
        %450 = vmatprep.subr.mxu0 0.0
        %451 = vmatpush1.xpose.msra.mxu0 %v403
        %452 = vmatprep.subr.mxu0 0.0
        %453 = vmatpush1.xpose.msra.mxu0 %v400
        %454 = vmatprep.subr.mxu0 0.0
        %455 = vmatpush1.xpose.msra.mxu0 %v397
        %456 = vmatprep.subr.mxu0 0.0
        %457 = vmatpush1.xpose.msra.mxu0 %v394
        %458 = vmatprep.subr.mxu0 0.0
        %459 = vmatpush1.xpose.msra.mxu0 %v391
        %460 = vmatprep.subr.mxu0 0.0
        %461 = vmatpush1.xpose.msra.mxu0 %v388
        %462 = vmatprep.subr.mxu0 0.0
        %463 = vmatpush1.xpose.msra.mxu0 %v385
        %464 = vmatprep.subr.mxu0 0.0
        %465 = vmatpush2.xpose.msra.mxu0 0.0
        %466 = vmatprep.subr.mxu0 0.0
        %467 = vmatpush2.xpose.msra.mxu0 0.0
        %468 = vmatprep.subr.mxu0 0.0
        %469 = vmatpush2.xpose.msra.mxu0 0.0
        %470 = vmatprep.subr.mxu0 0.0
        %471 = vmatpush2.xpose.msra.mxu0 0.0
        %472 = vmatprep.subr.mxu0 0.0
        %473 = vmatpush2.xpose.msra.mxu0 0.0
        %474 = vmatprep.subr.mxu0 0.0
        %475 = vmatpush2.xpose.msra.mxu0 0.0
        %476 = vmatprep.subr.mxu0 0.0
        %477 = vmatpush2.xpose.msra.mxu0 0.0
        %478 = vmatprep.subr.mxu0 0.0
        %479 = vmatpush2.xpose.msra.mxu0 0.0
        %480 = vmatprep.subr.mxu0 0.0
        %481 = vmatpush2.xpose.msra.mxu0 0.0
        %482 = vmatprep.subr.mxu0 0.0
        %483 = vmatpush2.xpose.msra.mxu0 0.0
        %484 = vmatprep.subr.mxu0 0.0
        %485 = vmatpush2.xpose.msra.mxu0 0.0
        %486 = vmatprep.subr.mxu0 0.0
        %487 = vmatpush2.xpose.msra.mxu0 0.0
        %488 = vmatprep.subr.mxu0 0.0
        %489 = vmatpush2.xpose.msra.mxu0 0.0
        %490 = vmatprep.subr.mxu0 0.0
        %491 = vmatpush2.xpose.msra.mxu0 0.0
        %492 = vmatprep.subr.mxu0 0.0
        %493 = vmatpush2.xpose.msra.mxu0 0.0
        %494 = vmatprep.subr.mxu0 0.0
        %495 = vmatpush2.xpose.msra.mxu0 0.0
        %496 = vmatprep.mubr.f32.mxu0 0.0
        %497 = vmatmul.mubr.f32.gmra.mxu0 %v379
        %v498 = vpop.f32.mrf.mxu0
        %v499 = vadd.f32 %v374, %v498
        %v500 = vpop.f32.mrf.mxu0
        %501 = vmatprep.mubr.f32.mxu0 0.0
        %502 = vmatmul.mubr.f32.gmra.mxu0 %v382
        %v503 = vpop.f32.mrf.mxu0
        %v504 = vadd.f32 %v377, %v503
        %v505 = vpop.f32.mrf.mxu0
        %506 = vdwg.mxu0
        %v508 = vsel %vm371, %v353, 0
        %510 = vmatprep.subr.mxu0 0.0
        %511 = vmatpush1.xpose.msra.mxu0 %v430
        %512 = vmatprep.subr.mxu0 0.0
        %513 = vmatpush1.xpose.msra.mxu0 %v427
        %514 = vmatprep.subr.mxu0 0.0
        %515 = vmatpush1.xpose.msra.mxu0 %v424
        %516 = vmatprep.subr.mxu0 0.0
        %517 = vmatpush1.xpose.msra.mxu0 %v421
        %518 = vmatprep.subr.mxu0 0.0
        %519 = vmatpush1.xpose.msra.mxu0 %v418
        %520 = vmatprep.subr.mxu0 0.0
        %521 = vmatpush1.xpose.msra.mxu0 %v415
        %522 = vmatprep.subr.mxu0 0.0
        %523 = vmatpush1.xpose.msra.mxu0 %v412
        %524 = vmatprep.subr.mxu0 0.0
        %525 = vmatpush1.xpose.msra.mxu0 %v409
        %526 = vmatprep.subr.mxu0 0.0
        %527 = vmatpush1.xpose.msra.mxu0 %v406
        %528 = vmatprep.subr.mxu0 0.0
        %529 = vmatpush1.xpose.msra.mxu0 %v403
        %530 = vmatprep.subr.mxu0 0.0
        %531 = vmatpush1.xpose.msra.mxu0 %v400
        %532 = vmatprep.subr.mxu0 0.0
        %533 = vmatpush1.xpose.msra.mxu0 %v397
        %534 = vmatprep.subr.mxu0 0.0
        %535 = vmatpush1.xpose.msra.mxu0 %v394
        %536 = vmatprep.subr.mxu0 0.0
        %537 = vmatpush1.xpose.msra.mxu0 %v391
        %538 = vmatprep.subr.mxu0 0.0
        %539 = vmatpush1.xpose.msra.mxu0 %v388
        %540 = vmatprep.subr.mxu0 0.0
        %541 = vmatpush1.xpose.msra.mxu0 %v385
        %542 = vmatprep.subr.mxu0 0.0
        %543 = vmatpush2.xpose.msra.mxu0 0.0
        %544 = vmatprep.subr.mxu0 0.0
        %545 = vmatpush2.xpose.msra.mxu0 0.0
        %546 = vmatprep.subr.mxu0 0.0
        %547 = vmatpush2.xpose.msra.mxu0 0.0
        %548 = vmatprep.subr.mxu0 0.0
        %549 = vmatpush2.xpose.msra.mxu0 0.0
        %550 = vmatprep.subr.mxu0 0.0
        %551 = vmatpush2.xpose.msra.mxu0 0.0
        %552 = vmatprep.subr.mxu0 0.0
        %553 = vmatpush2.xpose.msra.mxu0 0.0
        %554 = vmatprep.subr.mxu0 0.0
        %555 = vmatpush2.xpose.msra.mxu0 0.0
        %556 = vmatprep.subr.mxu0 0.0
        %557 = vmatpush2.xpose.msra.mxu0 0.0
        %558 = vmatprep.subr.mxu0 0.0
        %559 = vmatpush2.xpose.msra.mxu0 0.0
        %560 = vmatprep.subr.mxu0 0.0
        %561 = vmatpush2.xpose.msra.mxu0 0.0
        %562 = vmatprep.subr.mxu0 0.0
        %563 = vmatpush2.xpose.msra.mxu0 0.0
        %564 = vmatprep.subr.mxu0 0.0
        %565 = vmatpush2.xpose.msra.mxu0 0.0
        %566 = vmatprep.subr.mxu0 0.0
        %567 = vmatpush2.xpose.msra.mxu0 0.0
        %568 = vmatprep.subr.mxu0 0.0
        %569 = vmatpush2.xpose.msra.mxu0 0.0
        %570 = vmatprep.subr.mxu0 0.0
        %571 = vmatpush2.xpose.msra.mxu0 0.0
        %572 = vmatprep.subr.mxu0 0.0
        %573 = vmatpush2.xpose.msra.mxu0 0.0
        %574 = vmatprep.mubr.f32.mxu0 0.0
        %575 = vmatmul.mubr.f32.gmra.mxu0 %v508
        %v576 = vpop.f32.mrf.mxu0
        %v577 = vadd.f32 0.0, %v576
        %v578 = vpop.f32.mrf.mxu0
        %579 = vdwg.mxu0
        %v580 = vlaneseq
        %v581 = vshrl.u32 %v580, 7
        %v582 = vsub.s32 0, %v581
        %v583 = vrot.slane %v577, %v582
        %v584 = vadd.f32 %v499, %v583
        %v585 = vadd.f32 %v504, %v583
        %vm586 = vcmp.ne.f32.partialorder %v351, 0.0
        %v587 = vsel %vm586, 1, 0
        %v588 = vlaneseq
        %v589 = vshrl.u32 %v588, 7
        %v590 = vsub.s32 0, %v589
        %v591 = vrot.slane %v587, %v590
        %vm592 = vcmp.eq.s32.totalorder %v591, 1
        %v593 = vsel %vm592, %v584, -1e+30
        %v594 = vsel %vm592, %v585, -1e+30
        %595 = vmax.xlane.f32.xlu0 %v593
        %v596 = vpop.xlane.xlu0 %595
        %597 = vmax.xlane.f32.xlu0 %v594
        %v598 = vpop.xlane.xlu0 %597
        %v599 = vsub.f32 %v593, %v596
        %v600 = vsub.f32 %v594, %v598
        %v601 = vmul.f32 %v599, 1.442695
        %v602 = vpow.pop %v601
        %v603 = vmul.f32 %v600, 1.442695
        %v604 = vpow.pop %v603
        %605 = vadd.xlane.f32.xlu0 %v602
        %v606 = vpop.xlane.xlu0 %605
        %607 = vadd.xlane.f32.xlu0 %v604
        %v608 = vpop.xlane.xlu0 %607
        %v609 = vrcp.pop %v606
        %v610 = vrcp.pop %v608
        %v611 = vmul.f32 %v602, %v609
        %v612 = vmul.f32 %v604, %v610
        %vm613 = vcmp.ne.f32.partialorder %v349, 0.0
        %vm614 = vcmp.ne.f32.partialorder %v350, 0.0
        %v615 = vsel %vm613, 1, 0
        %v616 = vsel %vm614, 1, 0
        %617 = vset.pattern.permute.xlu0 0
        %618 = vperm.xlu0 %617, %v615
        %v619 = vpop.permute.xlu0 %618
        %620 = vset.pattern.permute.xlu0 0
        %621 = vperm.xlu0 %620, %v616
        %v622 = vpop.permute.xlu0 %621
        %vm623 = vcmp.eq.s32.totalorder %v619, 1
        %vm624 = vcmp.eq.s32.totalorder %v622, 1
        %v625 = vsel %vm623, %v584, -1e+30
        %v626 = vsel %vm624, %v585, -1e+30
        %v627 = vmax.f32 %v625, %v626
        %v628 = vrot.slane %v627, 4
        %v629 = vmax.f32 %v627, %v628
        %v630 = vrot.slane %v629, 2
        %v631 = vmax.f32 %v629, %v630
        %v632 = vrot.slane %v631, 1
        %v633 = vmax.f32 %v631, %v632
        %v634 = vsub.f32 %v625, %v633
        %v635 = vsub.f32 %v626, %v633
        %v636 = vmul.f32 %v634, 1.442695
        %v637 = vpow.pop %v636
        %v638 = vmul.f32 %v635, 1.442695
        %v639 = vpow.pop %v638
        %v640 = vadd.f32 %v637, %v639
        %v641 = vrot.slane %v640, 4
        %v642 = vadd.f32 %v640, %v641
        %v643 = vrot.slane %v642, 2
        %v644 = vadd.f32 %v642, %v643
        %v645 = vrot.slane %v644, 1
        %v646 = vadd.f32 %v644, %v645
        %v647 = vrcp.pop %v646
        %648 = vmatprep.subr.mxu0 0.0
        %649 = vmatpush1.msra.mxu0 %v348
        %650 = vmatprep.subr.mxu0 0.0
        %651 = vmatpush1.msra.mxu0 %v347
        %652 = vmatprep.subr.mxu0 0.0
        %653 = vmatpush1.msra.mxu0 %v346
        %654 = vmatprep.subr.mxu0 0.0
        %655 = vmatpush1.msra.mxu0 %v345
        %656 = vmatprep.subr.mxu0 0.0
        %657 = vmatpush1.msra.mxu0 %v344
        %658 = vmatprep.subr.mxu0 0.0
        %659 = vmatpush1.msra.mxu0 %v343
        %660 = vmatprep.subr.mxu0 0.0
        %661 = vmatpush1.msra.mxu0 %v342
        %662 = vmatprep.subr.mxu0 0.0
        %663 = vmatpush1.msra.mxu0 %v341
        %664 = vmatprep.subr.mxu0 0.0
        %665 = vmatpush1.msra.mxu0 %v340
        %666 = vmatprep.subr.mxu0 0.0
        %667 = vmatpush1.msra.mxu0 %v339
        %668 = vmatprep.subr.mxu0 0.0
        %669 = vmatpush1.msra.mxu0 %v338
        %670 = vmatprep.subr.mxu0 0.0
        %671 = vmatpush1.msra.mxu0 %v337
        %672 = vmatprep.subr.mxu0 0.0
        %673 = vmatpush1.msra.mxu0 %v336
        %674 = vmatprep.subr.mxu0 0.0
        %675 = vmatpush1.msra.mxu0 %v335
        %676 = vmatprep.subr.mxu0 0.0
        %677 = vmatpush1.msra.mxu0 %v334
        %678 = vmatprep.subr.mxu0 0.0
        %679 = vmatpush1.msra.mxu0 %v333
        %680 = vmatprep.subr.mxu0 0.0
        %681 = vmatpush2.msra.mxu0 0.0
        %682 = vmatprep.subr.mxu0 0.0
        %683 = vmatpush2.msra.mxu0 0.0
        %684 = vmatprep.subr.mxu0 0.0
        %685 = vmatpush2.msra.mxu0 0.0
        %686 = vmatprep.subr.mxu0 0.0
        %687 = vmatpush2.msra.mxu0 0.0
        %688 = vmatprep.subr.mxu0 0.0
        %689 = vmatpush2.msra.mxu0 0.0
        %690 = vmatprep.subr.mxu0 0.0
        %691 = vmatpush2.msra.mxu0 0.0
        %692 = vmatprep.subr.mxu0 0.0
        %693 = vmatpush2.msra.mxu0 0.0
        %694 = vmatprep.subr.mxu0 0.0
        %695 = vmatpush2.msra.mxu0 0.0
        %696 = vmatprep.subr.mxu0 0.0
        %697 = vmatpush2.msra.mxu0 0.0
        %698 = vmatprep.subr.mxu0 0.0
        %699 = vmatpush2.msra.mxu0 0.0
        %700 = vmatprep.subr.mxu0 0.0
        %701 = vmatpush2.msra.mxu0 0.0
        %702 = vmatprep.subr.mxu0 0.0
        %703 = vmatpush2.msra.mxu0 0.0
        %704 = vmatprep.subr.mxu0 0.0
        %705 = vmatpush2.msra.mxu0 0.0
        %706 = vmatprep.subr.mxu0 0.0
        %707 = vmatpush2.msra.mxu0 0.0
        %708 = vmatprep.subr.mxu0 0.0
        %709 = vmatpush2.msra.mxu0 0.0
        %710 = vmatprep.subr.mxu0 0.0
        %711 = vmatpush2.msra.mxu0 0.0
        %712 = vmatprep.mubr.f32.mxu0 0.0
        %713 = vmatmul.mubr.f32.gmra.mxu0 %v611
        %v714 = vpop.f32.mrf.mxu0
        %v715 = vadd.f32 0.0, %v714
        %v716 = vpop.f32.mrf.mxu0
        %717 = vmatprep.mubr.f32.mxu0 0.0
        %718 = vmatmul.mubr.f32.gmra.mxu0 %v612
        %v719 = vpop.f32.mrf.mxu0
        %v720 = vadd.f32 0.0, %v719
        %v721 = vpop.f32.mrf.mxu0
        %722 = vdwg.mxu0
        %723 = vxpose.xlu0.b32.start [1/16] %v637, 128
        %724 = vxpose.xlu0.b32.cont [2/16] %v639, 128
        %725 = vxpose.xlu0.b32.cont [3/16] 0.0, 128
        %726 = vxpose.xlu0.b32.cont [4/16] 0.0, 128
        %727 = vxpose.xlu0.b32.cont [5/16] 0.0, 128
        %728 = vxpose.xlu0.b32.cont [6/16] 0.0, 128
        %729 = vxpose.xlu0.b32.cont [7/16] 0.0, 128
        %730 = vxpose.xlu0.b32.cont [8/16] 0.0, 128
        %731 = vxpose.xlu0.b32.cont [9/16] 0.0, 128
        %732 = vxpose.xlu0.b32.cont [10/16] 0.0, 128
        %733 = vxpose.xlu0.b32.cont [11/16] 0.0, 128
        %734 = vxpose.xlu0.b32.cont [12/16] 0.0, 128
        %735 = vxpose.xlu0.b32.cont [13/16] 0.0, 128
        %736 = vxpose.xlu0.b32.cont [14/16] 0.0, 128
        %737 = vxpose.xlu0.b32.cont [15/16] 0.0, 128
        %738 = vxpose.xlu0.b32.end [16/16] 0.0, 128
        %v739 = vpop.trf.xlu0
        %v740 = vpop.trf.xlu0
        %v741 = vpop.trf.xlu0
        %v742 = vpop.trf.xlu0
        %v743 = vpop.trf.xlu0
        %v744 = vpop.trf.xlu0
        %v745 = vpop.trf.xlu0
        %v746 = vpop.trf.xlu0
        %v747 = vpop.trf.xlu0
        %v748 = vpop.trf.xlu0
        %v749 = vpop.trf.xlu0
        %v750 = vpop.trf.xlu0
        %v751 = vpop.trf.xlu0
        %v752 = vpop.trf.xlu0
        %v753 = vpop.trf.xlu0
        %v754 = vpop.trf.xlu0
        %vm755 = vcmask 130048
        %v757 = vsel %vm755, %v739, 0
        %v760 = vsel %vm755, %v740, 0
        %v763 = vsel %vm755, %v741, 0
        %v766 = vsel %vm755, %v742, 0
        %v769 = vsel %vm755, %v743, 0
        %v772 = vsel %vm755, %v744, 0
        %v775 = vsel %vm755, %v745, 0
        %v778 = vsel %vm755, %v746, 0
        %v781 = vsel %vm755, %v747, 0
        %v784 = vsel %vm755, %v748, 0
        %v787 = vsel %vm755, %v749, 0
        %v790 = vsel %vm755, %v750, 0
        %v793 = vsel %vm755, %v751, 0
        %v796 = vsel %vm755, %v752, 0
        %v799 = vsel %vm755, %v753, 0
        %v802 = vsel %vm755, %v754, 0
        %804 = vmatprep.subr.mxu0 0.0
        %805 = vmatpush1.msra.mxu0 0.0
        %806 = vmatprep.subr.mxu0 0.0
        %807 = vmatpush1.msra.mxu0 0.0
        %808 = vmatprep.subr.mxu0 0.0
        %809 = vmatpush1.msra.mxu0 0.0
        %810 = vmatprep.subr.mxu0 0.0
        %811 = vmatpush1.msra.mxu0 0.0
        %812 = vmatprep.subr.mxu0 0.0
        %813 = vmatpush1.msra.mxu0 0.0
        %814 = vmatprep.subr.mxu0 0.0
        %815 = vmatpush1.msra.mxu0 0.0
        %816 = vmatprep.subr.mxu0 0.0
        %817 = vmatpush1.msra.mxu0 0.0
        %818 = vmatprep.subr.mxu0 0.0
        %819 = vmatpush1.msra.mxu0 0.0
        %820 = vmatprep.subr.mxu0 0.0
        %821 = vmatpush1.msra.mxu0 0.0
        %822 = vmatprep.subr.mxu0 0.0
        %823 = vmatpush1.msra.mxu0 0.0
        %824 = vmatprep.subr.mxu0 0.0
        %825 = vmatpush1.msra.mxu0 0.0
        %826 = vmatprep.subr.mxu0 0.0
        %827 = vmatpush1.msra.mxu0 0.0
        %828 = vmatprep.subr.mxu0 0.0
        %829 = vmatpush1.msra.mxu0 0.0
        %830 = vmatprep.subr.mxu0 0.0
        %831 = vmatpush1.msra.mxu0 0.0
        %832 = vmatprep.subr.mxu0 0.0
        %833 = vmatpush1.msra.mxu0 %v332
        %834 = vmatprep.subr.mxu0 0.0
        %835 = vmatpush1.msra.mxu0 %v331
        %836 = vmatprep.subr.mxu0 0.0
        %837 = vmatpush2.msra.mxu0 0.0
        %838 = vmatprep.subr.mxu0 0.0
        %839 = vmatpush2.msra.mxu0 0.0
        %840 = vmatprep.subr.mxu0 0.0
        %841 = vmatpush2.msra.mxu0 0.0
        %842 = vmatprep.subr.mxu0 0.0
        %843 = vmatpush2.msra.mxu0 0.0
        %844 = vmatprep.subr.mxu0 0.0
        %845 = vmatpush2.msra.mxu0 0.0
        %846 = vmatprep.subr.mxu0 0.0
        %847 = vmatpush2.msra.mxu0 0.0
        %848 = vmatprep.subr.mxu0 0.0
        %849 = vmatpush2.msra.mxu0 0.0
        %850 = vmatprep.subr.mxu0 0.0
        %851 = vmatpush2.msra.mxu0 0.0
        %852 = vmatprep.subr.mxu0 0.0
        %853 = vmatpush2.msra.mxu0 0.0
        %854 = vmatprep.subr.mxu0 0.0
        %855 = vmatpush2.msra.mxu0 0.0
        %856 = vmatprep.subr.mxu0 0.0
        %857 = vmatpush2.msra.mxu0 0.0
        %858 = vmatprep.subr.mxu0 0.0
        %859 = vmatpush2.msra.mxu0 0.0
        %860 = vmatprep.subr.mxu0 0.0
        %861 = vmatpush2.msra.mxu0 0.0
        %862 = vmatprep.subr.mxu0 0.0
        %863 = vmatpush2.msra.mxu0 0.0
        %864 = vmatprep.subr.mxu0 0.0
        %865 = vmatpush2.msra.mxu0 0.0
        %866 = vmatprep.subr.mxu0 0.0
        %867 = vmatpush2.msra.mxu0 0.0
        %868 = vmatprep.mubr.f32.mxu0 0.0
        %869 = vmatmul.mubr.f32.gmra.mxu0 %v757
        %v870 = vpop.f32.mrf.mxu0
        %v871 = vadd.f32 0.0, %v870
        %v872 = vpop.f32.mrf.mxu0
        %873 = vmatprep.mubr.f32.mxu0 0.0
        %874 = vmatmul.mubr.f32.gmra.mxu0 %v760
        %v875 = vpop.f32.mrf.mxu0
        %v876 = vadd.f32 0.0, %v875
        %v877 = vpop.f32.mrf.mxu0
        %878 = vmatprep.mubr.f32.mxu0 0.0
        %879 = vmatmul.mubr.f32.gmra.mxu0 %v763
        %v880 = vpop.f32.mrf.mxu0
        %v881 = vadd.f32 0.0, %v880
        %v882 = vpop.f32.mrf.mxu0
        %883 = vmatprep.mubr.f32.mxu0 0.0
        %884 = vmatmul.mubr.f32.gmra.mxu0 %v766
        %v885 = vpop.f32.mrf.mxu0
        %v886 = vadd.f32 0.0, %v885
        %v887 = vpop.f32.mrf.mxu0
        %888 = vmatprep.mubr.f32.mxu0 0.0
        %889 = vmatmul.mubr.f32.gmra.mxu0 %v769
        %v890 = vpop.f32.mrf.mxu0
        %v891 = vadd.f32 0.0, %v890
        %v892 = vpop.f32.mrf.mxu0
        %893 = vmatprep.mubr.f32.mxu0 0.0
        %894 = vmatmul.mubr.f32.gmra.mxu0 %v772
        %v895 = vpop.f32.mrf.mxu0
        %v896 = vadd.f32 0.0, %v895
        %v897 = vpop.f32.mrf.mxu0
        %898 = vmatprep.mubr.f32.mxu0 0.0
        %899 = vmatmul.mubr.f32.gmra.mxu0 %v775
        %v900 = vpop.f32.mrf.mxu0
        %v901 = vadd.f32 0.0, %v900
        %v902 = vpop.f32.mrf.mxu0
        %903 = vmatprep.mubr.f32.mxu0 0.0
        %904 = vmatmul.mubr.f32.gmra.mxu0 %v778
        %v905 = vpop.f32.mrf.mxu0
        %v906 = vadd.f32 0.0, %v905
        %v907 = vpop.f32.mrf.mxu0
        %908 = vmatprep.mubr.f32.mxu0 0.0
        %909 = vmatmul.mubr.f32.gmra.mxu0 %v781
        %v910 = vpop.f32.mrf.mxu0
        %v911 = vadd.f32 0.0, %v910
        %v912 = vpop.f32.mrf.mxu0
        %913 = vmatprep.mubr.f32.mxu0 0.0
        %914 = vmatmul.mubr.f32.gmra.mxu0 %v784
        %v915 = vpop.f32.mrf.mxu0
        %v916 = vadd.f32 0.0, %v915
        %v917 = vpop.f32.mrf.mxu0
        %918 = vmatprep.mubr.f32.mxu0 0.0
        %919 = vmatmul.mubr.f32.gmra.mxu0 %v787
        %v920 = vpop.f32.mrf.mxu0
        %v921 = vadd.f32 0.0, %v920
        %v922 = vpop.f32.mrf.mxu0
        %923 = vmatprep.mubr.f32.mxu0 0.0
        %924 = vmatmul.mubr.f32.gmra.mxu0 %v790
        %v925 = vpop.f32.mrf.mxu0
        %v926 = vadd.f32 0.0, %v925
        %v927 = vpop.f32.mrf.mxu0
        %928 = vmatprep.mubr.f32.mxu0 0.0
        %929 = vmatmul.mubr.f32.gmra.mxu0 %v793
        %v930 = vpop.f32.mrf.mxu0
        %v931 = vadd.f32 0.0, %v930
        %v932 = vpop.f32.mrf.mxu0
        %933 = vmatprep.mubr.f32.mxu0 0.0
        %934 = vmatmul.mubr.f32.gmra.mxu0 %v796
        %v935 = vpop.f32.mrf.mxu0
        %v936 = vadd.f32 0.0, %v935
        %v937 = vpop.f32.mrf.mxu0
        %938 = vmatprep.mubr.f32.mxu0 0.0
        %939 = vmatmul.mubr.f32.gmra.mxu0 %v799
        %v940 = vpop.f32.mrf.mxu0
        %v941 = vadd.f32 0.0, %v940
        %v942 = vpop.f32.mrf.mxu0
        %943 = vmatprep.mubr.f32.mxu0 0.0
        %944 = vmatmul.mubr.f32.gmra.mxu0 %v802
        %v945 = vpop.f32.mrf.mxu0
        %v946 = vadd.f32 0.0, %v945
        %v947 = vpop.f32.mrf.mxu0
        %948 = vdwg.mxu0
        %950 = vbcast.lane.b32.xlu0 %v647, 256
        %v951 = vpop.permute.xlu0 %950
        %s953 = sor.u32 256, 8
        %954 = vbcast.lane.b32.xlu0 %v647, %s953
        %v955 = vpop.permute.xlu0 %954
        %s957 = sor.u32 256, 16
        %958 = vbcast.lane.b32.xlu0 %v647, %s957
        %v959 = vpop.permute.xlu0 %958
        %s961 = sor.u32 256, 24
        %962 = vbcast.lane.b32.xlu0 %v647, %s961
        %v963 = vpop.permute.xlu0 %962
        %s965 = sor.u32 256, 32
        %966 = vbcast.lane.b32.xlu0 %v647, %s965
        %v967 = vpop.permute.xlu0 %966
        %s969 = sor.u32 256, 40
        %970 = vbcast.lane.b32.xlu0 %v647, %s969
        %v971 = vpop.permute.xlu0 %970
        %s973 = sor.u32 256, 48
        %974 = vbcast.lane.b32.xlu0 %v647, %s973
        %v975 = vpop.permute.xlu0 %974
        %s977 = sor.u32 256, 56
        %978 = vbcast.lane.b32.xlu0 %v647, %s977
        %v979 = vpop.permute.xlu0 %978
        %s981 = sor.u32 256, 64
        %982 = vbcast.lane.b32.xlu0 %v647, %s981
        %v983 = vpop.permute.xlu0 %982
        %s985 = sor.u32 256, 72
        %986 = vbcast.lane.b32.xlu0 %v647, %s985
        %v987 = vpop.permute.xlu0 %986
        %s989 = sor.u32 256, 80
        %990 = vbcast.lane.b32.xlu0 %v647, %s989
        %v991 = vpop.permute.xlu0 %990
        %s993 = sor.u32 256, 88
        %994 = vbcast.lane.b32.xlu0 %v647, %s993
        %v995 = vpop.permute.xlu0 %994
        %s997 = sor.u32 256, 96
        %998 = vbcast.lane.b32.xlu0 %v647, %s997
        %v999 = vpop.permute.xlu0 %998
        %s1001 = sor.u32 256, 104
        %1002 = vbcast.lane.b32.xlu0 %v647, %s1001
        %v1003 = vpop.permute.xlu0 %1002
        %s1005 = sor.u32 256, 112
        %1006 = vbcast.lane.b32.xlu0 %v647, %s1005
        %v1007 = vpop.permute.xlu0 %1006
        %s1009 = sor.u32 256, 120
        %1010 = vbcast.lane.b32.xlu0 %v647, %s1009
        %v1011 = vpop.permute.xlu0 %1010
        %v1012 = vmul.f32 %v871, %v951
        %v1013 = vmul.f32 %v876, %v955
        %v1014 = vmul.f32 %v881, %v959
        %v1015 = vmul.f32 %v886, %v963
        %v1016 = vmul.f32 %v891, %v967
        %v1017 = vmul.f32 %v896, %v971
        %v1018 = vmul.f32 %v901, %v975
        %v1019 = vmul.f32 %v906, %v979
        %v1020 = vmul.f32 %v911, %v983
        %v1021 = vmul.f32 %v916, %v987
        %v1022 = vmul.f32 %v921, %v991
        %v1023 = vmul.f32 %v926, %v995
        %v1024 = vmul.f32 %v931, %v999
        %v1025 = vmul.f32 %v936, %v1003
        %v1026 = vmul.f32 %v941, %v1007
        %v1027 = vmul.f32 %v946, %v1011
        %1028 = vmatprep.subr.mxu0 0.0
        %1029 = vmatpush1.msra.mxu0 %v1027
        %1030 = vmatprep.subr.mxu0 0.0
        %1031 = vmatpush1.msra.mxu0 %v1026
        %1032 = vmatprep.subr.mxu0 0.0
        %1033 = vmatpush1.msra.mxu0 %v1025
        %1034 = vmatprep.subr.mxu0 0.0
        %1035 = vmatpush1.msra.mxu0 %v1024
        %1036 = vmatprep.subr.mxu0 0.0
        %1037 = vmatpush1.msra.mxu0 %v1023
        %1038 = vmatprep.subr.mxu0 0.0
        %1039 = vmatpush1.msra.mxu0 %v1022
        %1040 = vmatprep.subr.mxu0 0.0
        %1041 = vmatpush1.msra.mxu0 %v1021
        %1042 = vmatprep.subr.mxu0 0.0
        %1043 = vmatpush1.msra.mxu0 %v1020
        %1044 = vmatprep.subr.mxu0 0.0
        %1045 = vmatpush1.msra.mxu0 %v1019
        %1046 = vmatprep.subr.mxu0 0.0
        %1047 = vmatpush1.msra.mxu0 %v1018
        %1048 = vmatprep.subr.mxu0 0.0
        %1049 = vmatpush1.msra.mxu0 %v1017
        %1050 = vmatprep.subr.mxu0 0.0
        %1051 = vmatpush1.msra.mxu0 %v1016
        %1052 = vmatprep.subr.mxu0 0.0
        %1053 = vmatpush1.msra.mxu0 %v1015
        %1054 = vmatprep.subr.mxu0 0.0
        %1055 = vmatpush1.msra.mxu0 %v1014
        %1056 = vmatprep.subr.mxu0 0.0
        %1057 = vmatpush1.msra.mxu0 %v1013
        %1058 = vmatprep.subr.mxu0 0.0
        %1059 = vmatpush1.msra.mxu0 %v1012
        %1060 = vmatprep.subr.mxu0 0.0
        %1061 = vmatpush2.msra.mxu0 0.0
        %1062 = vmatprep.subr.mxu0 0.0
        %1063 = vmatpush2.msra.mxu0 0.0
        %1064 = vmatprep.subr.mxu0 0.0
        %1065 = vmatpush2.msra.mxu0 0.0
        %1066 = vmatprep.subr.mxu0 0.0
        %1067 = vmatpush2.msra.mxu0 0.0
        %1068 = vmatprep.subr.mxu0 0.0
        %1069 = vmatpush2.msra.mxu0 0.0
        %1070 = vmatprep.subr.mxu0 0.0
        %1071 = vmatpush2.msra.mxu0 0.0
        %1072 = vmatprep.subr.mxu0 0.0
        %1073 = vmatpush2.msra.mxu0 0.0
        %1074 = vmatprep.subr.mxu0 0.0
        %1075 = vmatpush2.msra.mxu0 0.0
        %1076 = vmatprep.subr.mxu0 0.0
        %1077 = vmatpush2.msra.mxu0 0.0
        %1078 = vmatprep.subr.mxu0 0.0
        %1079 = vmatpush2.msra.mxu0 0.0
        %1080 = vmatprep.subr.mxu0 0.0
        %1081 = vmatpush2.msra.mxu0 0.0
        %1082 = vmatprep.subr.mxu0 0.0
        %1083 = vmatpush2.msra.mxu0 0.0
        %1084 = vmatprep.subr.mxu0 0.0
        %1085 = vmatpush2.msra.mxu0 0.0
        %1086 = vmatprep.subr.mxu0 0.0
        %1087 = vmatpush2.msra.mxu0 0.0
        %1088 = vmatprep.subr.mxu0 0.0
        %1089 = vmatpush2.msra.mxu0 0.0
        %1090 = vmatprep.subr.mxu0 0.0
        %1091 = vmatpush2.msra.mxu0 0.0
        %1092 = vmatprep.mubr.f32.mxu0 0.0
        %1093 = vmatmul.mubr.f32.gmra.mxu0 %v611
        %v1094 = vpop.f32.mrf.mxu0
        %v1095 = vadd.f32 0.0, %v1094
        %v1096 = vpop.f32.mrf.mxu0
        %1097 = vmatprep.mubr.f32.mxu0 0.0
        %1098 = vmatmul.mubr.f32.gmra.mxu0 %v612
        %v1099 = vpop.f32.mrf.mxu0
        %v1100 = vadd.f32 0.0, %v1099
        %v1101 = vpop.f32.mrf.mxu0
        %1102 = vdwg.mxu0
        %v1103 = vmul.f32 %v331, %v715
        %v1104 = vmul.f32 %v332, %v720
        %v1105 = vmul.f32 %v331, %v1095
        %v1106 = vmul.f32 %v332, %v1100
        %1109 = vrot.lane.b32.xlu0 %v715, 32
        %v1110 = vpop.permute.xlu0 %1109
        %1111 = vrot.lane.b32.xlu0 %v720, 32
        %v1112 = vpop.permute.xlu0 %1111
        %1117 = vrot.lane.b32.xlu0 %v1103, 64
        %v1118 = vpop.permute.xlu0 %1117
        %1119 = vrot.lane.b32.xlu0 %v1104, 64
        %v1120 = vpop.permute.xlu0 %1119
        %1125 = vrot.lane.b32.xlu0 %v1105, 96
        %v1126 = vpop.permute.xlu0 %1125
        %1127 = vrot.lane.b32.xlu0 %v1106, 96
        %v1128 = vpop.permute.xlu0 %1127
        %v1131 = vsel %vm371, %v331, %v1110
        %v1132 = vsel %vm371, %v332, %v1112
        %vm1133 = vcmask 523264
        %v1134 = vsel %vm1133, %v1131, %v1118
        %v1135 = vsel %vm1133, %v1132, %v1120
        %vm1136 = vcmask 785408
        %v1137 = vsel %vm1136, %v1134, %v1126
        %v1138 = vsel %vm1136, %v1135, %v1128
        %1139 = vst [vmem:[%s312] sm:$0xff] %v1137
        %1140 = vst [vmem:[%s312 + $0x8] sm:$0xff] %v1138
        %s1141 = sand.u32 %s196, 1
        %s1142 = scalar_lea.sflag [#allocation3], %s1141
        %s1143 = sand.u32 %s196, 1
        %s1144 = smul.addr %s1143, 16
        %s1145 = scalar_lea.vmem [#allocation2], %s1144
        // Predicated region
        $region49: #{tpu_custom_call.1} parent=47 // pred_check
          %p1146 = pneg %p206
        $region50: #{tpu_custom_call.1} parent=47 // pred_check_branch
          %1148 = sbr.rel (%p1146) target = $region52
        $region51: #{tpu_custom_call.1} parent=47 // pred_region
          %s1150 = ssub.s32 256, 256
          %1151 = vsyncadd %s1142, %s1150
          %s1152 = smul.addr %s21, 2
          %s1153 = smul.addr %s1152, 128
          %s1154 = scalar_lea.hbm %s7, %s1153
          %s1155 = sshll.u32 %s1145, 4
          %s1156 = int_to_ptr.vmem [resolvable:$true] %s1155
          %1161 = dma.vmem_to_hbm [thread:$0]  %s1156, 256, %s1154, %s1142, 128, 128, 8
        $region52: #{tpu_custom_call.1} parent=47 // pred_fallthru
          _
      $region48: #{tpu_custom_call.1} parent=5 // pred_fallthru
        _
      %p1162 = scmp.le.s32.totalorder 2, %s16
      // Predicated region
      $region53: #{tpu_custom_call.1} parent=5 // pred_check
        %p1163 = pneg %p1162
      $region54: #{tpu_custom_call.1} parent=5 // pred_check_branch
        %1165 = sbr.rel (%p1163) target = $region56
      $region55: #{tpu_custom_call.1} parent=5 // pred_region
        %s1166 = ssub.s32 %s16, 2
        // Predicated region
        $region57: #{tpu_custom_call.1} parent=55 // pred_check
          %p1167 = pneg %p212
        $region58: #{tpu_custom_call.1} parent=55 // pred_check_branch
          %1169 = sbr.rel (%p1167) target = $region60
        $region59: #{tpu_custom_call.1} parent=55 // pred_region
          %s1170 = sand.u32 %s197, 1
          %s1171 = scalar_lea.sflag [#allocation3], %s1170
          %s1172 = sand.u32 %s197, 1
          %s1173 = smul.addr %s1172, 16
          %s1174 = scalar_lea.vmem [#allocation2], %s1173
          %1175 = dma.done %s1171, 256
        $region60: #{tpu_custom_call.1} parent=55 // pred_fallthru
          _
      $region56: #{tpu_custom_call.1} parent=5 // pred_fallthru
        _
    $region6: #{tpu_custom_call.1} parent=1 // loop_footer
      %s20 = sadd.s32 1, %s16
    $region7: #{tpu_custom_call.1} parent=1 // loop_footer_branch
      %15 = sbr.rel target = $region3
    $region8: #{tpu_custom_call.1} parent=1 // loop_exit
      _
    %1176 = vsyncpa [#allocation3], 1
    %s1177 = scalar_lea.sflag [#allocation3], 1
    %1178 = vsyncpa %s1177, 1

</llo_original>
